<compile_context>
chip_gen: v7x
topology: tpu7x:2x2x1
jax: 0.10.0
libtpu: 0.0.40
codegen_flags: <defaults>
</compile_context>

<pallas_src>
import functools

import jax
import jax.numpy as jnp
from jax import lax
from jax.experimental import pallas as pl
from jax.experimental.pallas import tpu as pltpu

ALPHA = 0.01
EPS = 1e-6
DEFAULT_TILE_B = 512  # rows per grid step (multiple of 8); clamped to batch.


def _round_up(n, m):
    return ((n + m - 1) // m) * m


def _dynamics_kernel(x_ref, wcat_ref, b1_ref, w2_ref, b2_ref, o_ref, *,
                     alpha, scale_fx, hidden):
    x = x_ref[...]                                                   # (TB, D)

    # ---- fused x-side matmul: [x @ W1 | x @ P] in one MXU pass ----
    t = jnp.dot(x, wcat_ref[...], preferred_element_type=jnp.float32)  # (TB, H+D)
    h_pre = t[:, :hidden]                                            # (TB, H)
    px = t[:, hidden:]                                               # (TB, D)

    # ---- fhat: MLP ----
    h = jnp.tanh(h_pre + b1_ref[...])                                # (TB, H)
    fx = jnp.dot(h, w2_ref[...], preferred_element_type=jnp.float32) + b2_ref[...]
    # (TB, D)

    if scale_fx:
        # fx / clamp(||fx||, min=1)  ==  fx * rsqrt(max(||fx||^2, 1))
        nrm_sq = jnp.sum(fx * fx, axis=1, keepdims=True)
        fx = fx * lax.rsqrt(jnp.maximum(nrm_sq, 1.0))

    # ---- V(x) = x^T P x and its gradient (P symmetric => dV/dx = 2 P x) ----
    vx = jnp.sum(x * px, axis=1, keepdims=True)                      # (TB, 1)
    gV = 2.0 * px                                                    # (TB, D)

    # ---- Lyapunov projection ----
    lyap = jnp.sum(gV * fx, axis=1, keepdims=True) + alpha * vx      # (TB, 1)
    denom = jnp.sum(gV * gV, axis=1, keepdims=True) + EPS            # (TB, 1)
    # EUP approx reciprocal + one Newton refinement (restores ~f32 precision).
    r = pl.reciprocal(denom, approx=True)
    r = r * (2.0 - denom * r)
    proj = jnp.maximum(lyap, 0.0) * r                                # (TB, 1)

    o_ref[...] = fx - gV * proj                                      # (TB, D)


def dynamics_forward(x, w1, b1, w2, b2, p, *, alpha=ALPHA, scale_fx=False,
                     tile_b=DEFAULT_TILE_B):
    """Pallas forward for Dynamics.

    P must be symmetric (e.g. A^T A + eps*I); the analytic gradient 2*P*x is
    only equal to autograd's (P + P^T)x in that case.
    """
    B, D = x.shape
    H = w1.shape[1]
    assert w1.shape == (D, H) and w2.shape == (H, D) and p.shape == (D, D)

    # Batch tile: multiple of 8 sublanes, clamped to the (padded) batch size.
    tile_b = max(8, min(tile_b, _round_up(B, 8)))
    tile_b = _round_up(tile_b, 8)
    B_pad = _round_up(B, tile_b)
    if B_pad != B:
        # Zero rows are harmless: rows are fully independent and sliced away.
        x = jnp.pad(x, ((0, B_pad - B), (0, 0)))

    # Fuse the two x-side matmuls (shared LHS): W_cat = [W1 | P]  -> (D, H+D).
    w_cat = jnp.concatenate([w1, p], axis=1).astype(jnp.float32)
    b1 = b1.reshape(1, H).astype(jnp.float32)
    b2 = b2.reshape(1, D).astype(jnp.float32)
    w2 = w2.astype(jnp.float32)
    x = x.astype(jnp.float32)

    grid = (B_pad // tile_b,)
    kernel = functools.partial(_dynamics_kernel, alpha=alpha,
                               scale_fx=scale_fx, hidden=H)

    # Advisory cost estimate for XLA's scheduler.
    flops = 2 * B_pad * D * (H + D) + 2 * B_pad * H * D + 10 * B_pad * D
    bytes_accessed = 4 * (2 * B_pad * D + D * (H + D) + H * D + H + D)
    cost = pl.CostEstimate(flops=flops,
                           transcendentals=B_pad * (H + 2),
                           bytes_accessed=bytes_accessed)

    out = pl.pallas_call(
        kernel,
        out_shape=jax.ShapeDtypeStruct((B_pad, D), jnp.float32),
        grid=grid,
        in_specs=[
            pl.BlockSpec((tile_b, D), lambda i: (i, 0)),    # x: streamed per tile
            pl.BlockSpec((D, H + D), lambda i: (0, 0)),     # W_cat: VMEM-resident
            pl.BlockSpec((1, H), lambda i: (0, 0)),         # b1:    VMEM-resident
            pl.BlockSpec((H, D), lambda i: (0, 0)),         # W2:    VMEM-resident
            pl.BlockSpec((1, D), lambda i: (0, 0)),         # b2:    VMEM-resident
        ],
        out_specs=pl.BlockSpec((tile_b, D), lambda i: (i, 0)),
        compiler_params=pltpu.CompilerParams(
            dimension_semantics=("parallel",),              # 2 TCs on v7x
            vmem_limit_bytes=32 * 1024 * 1024,              # fits v5e/v6e/v7x
        ),
        cost_estimate=cost,
    )(x, w_cat, b1, w2, b2)

    return out[:B] if B_pad != B else out


def dynamics_reference(x, w1, b1, w2, b2, p, *, alpha=ALPHA, scale_fx=False):
    """Pure-JAX reference mirroring the PyTorch forward."""
    h = jnp.tanh(x @ w1 + b1)
    fx = h @ w2 + b2
    if scale_fx:
        fx = fx / jnp.maximum(jnp.linalg.norm(fx, axis=1, keepdims=True), 1.0)
    px = x @ p
    vx = jnp.sum(x * px, axis=1)            # (B,)
    gV = 2.0 * px                           # (B, D)
    lyap = jnp.sum(gV * fx, axis=1) + alpha * vx
    proj = jax.nn.relu(lyap) / (jnp.sum(gV ** 2, axis=1) + EPS)
    return fx - gV * proj[:, None]


if __name__ == "__main__":
    # Small test shapes; tile_b=16 forces a multi-step grid with a padded
    # final tile (40 -> 48 rows), exercising the streaming + padding paths.
    B, D, H = 40, 32, 32

    key = jax.random.PRNGKey(0)
    kx, k1, k2, k3, k4, k5 = jax.random.split(key, 6)

    x = jax.random.normal(kx, (B, D), dtype=jnp.float32)

    # fhat parameters
    w1 = 0.1 * jax.random.normal(k1, (D, H), dtype=jnp.float32)
    b1 = 0.1 * jax.random.normal(k2, (1, H), dtype=jnp.float32)
    w2 = 0.1 * jax.random.normal(k3, (H, D), dtype=jnp.float32)
    b2 = 0.1 * jax.random.normal(k4, (1, D), dtype=jnp.float32)

    # V_module parameters: P = A^T A + eps*I (symmetric PD)
    a = 0.1 * jax.random.normal(k5, (D, D), dtype=jnp.float32)
    p = a.T @ a + 0.1 * jnp.eye(D, dtype=jnp.float32)

    for sf in (False, True):
        out = dynamics_forward(x, w1, b1, w2, b2, p, alpha=ALPHA,
                               scale_fx=sf, tile_b=16)
        out = jax.block_until_ready(out)
        ref = dynamics_reference(x, w1, b1, w2, b2, p, alpha=ALPHA, scale_fx=sf)
        assert out.shape == (B, D)
        assert jnp.allclose(out, ref, atol=1e-4, rtol=1e-4), \
            f"mismatch vs reference (scale_fx={sf})"

    print("KERNEL_OK")
</pallas_src>

<mosaic_0001>
module attributes {stable_mosaic.version = 11 : i64} {
  func.func @_dynamics_kernel(%arg0: i32, %arg1: memref<16x32xf32, #tpu.memory_space<vmem>>, %arg2: memref<32x64xf32, #tpu.memory_space<vmem>>, %arg3: memref<1x32xf32, #tpu.memory_space<vmem>>, %arg4: memref<32x32xf32, #tpu.memory_space<vmem>>, %arg5: memref<1x32xf32, #tpu.memory_space<vmem>>, %arg6: memref<16x32xf32, #tpu.memory_space<vmem>>) attributes {dimension_semantics = [#tpu.dimension_semantics<parallel>], iteration_bounds = array<i64: 3>, scalar_prefetch = 0 : i64, scratch_operands = 0 : i64, tpu.core_type = #tpu.core_type<tc>, window_params = [{transform_indices = @transform_0, window_bounds = array<i64: 16, 32>}, {pipeline_mode = #tpu.pipeline_mode<synchronous>, transform_indices = @transform_1, window_bounds = array<i64: 32, 64>}, {pipeline_mode = #tpu.pipeline_mode<synchronous>, transform_indices = @transform_2, window_bounds = array<i64: 1, 32>}, {pipeline_mode = #tpu.pipeline_mode<synchronous>, transform_indices = @transform_3, window_bounds = array<i64: 32, 32>}, {pipeline_mode = #tpu.pipeline_mode<synchronous>, transform_indices = @transform_4, window_bounds = array<i64: 1, 32>}, {transform_indices = @transform_5, window_bounds = array<i64: 16, 32>}]} {
    %c0 = arith.constant 0 : index
    %c0_0 = arith.constant 0 : index
    %0 = vector.load %arg1[%c0, %c0_0] : memref<16x32xf32, #tpu.memory_space<vmem>>, vector<16x32xf32>
    %c0_1 = arith.constant 0 : index
    %c0_2 = arith.constant 0 : index
    %1 = vector.load %arg2[%c0_1, %c0_2] : memref<32x64xf32, #tpu.memory_space<vmem>>, vector<32x64xf32>
    %cst = arith.constant dense<0.000000e+00> : vector<16x64xf32>
    %2 = tpu.matmul %0, %1, %cst {dimension_numbers = #tpu.dot_dimension_numbers<[1], [0], [0], [1], [0, 0, 1, 1], [], []>} : vector<16x32xf32>, vector<32x64xf32>, vector<16x64xf32> -> vector<16x64xf32>
    %3 = vector.extract_strided_slice %2 {offsets = [0, 0], sizes = [16, 32], strides = [1, 1]} : vector<16x64xf32> to vector<16x32xf32>
    %4 = vector.extract_strided_slice %2 {offsets = [0, 32], sizes = [16, 32], strides = [1, 1]} : vector<16x64xf32> to vector<16x32xf32>
    %c0_3 = arith.constant 0 : index
    %c0_4 = arith.constant 0 : index
    %5 = vector.load %arg3[%c0_3, %c0_4] : memref<1x32xf32, #tpu.memory_space<vmem>>, vector<1x32xf32>
    %6 = vector.broadcast %5 : vector<1x32xf32> to vector<16x32xf32>
    %7 = arith.addf %3, %6 : vector<16x32xf32>
    %8 = math.tanh %7 : vector<16x32xf32>
    %c0_5 = arith.constant 0 : index
    %c0_6 = arith.constant 0 : index
    %9 = vector.load %arg4[%c0_5, %c0_6] : memref<32x32xf32, #tpu.memory_space<vmem>>, vector<32x32xf32>
    %cst_7 = arith.constant dense<0.000000e+00> : vector<16x32xf32>
    %10 = tpu.matmul %8, %9, %cst_7 {dimension_numbers = #tpu.dot_dimension_numbers<[1], [0], [0], [1], [0, 0, 1, 1], [], []>} : vector<16x32xf32>, vector<32x32xf32>, vector<16x32xf32> -> vector<16x32xf32>
    %c0_8 = arith.constant 0 : index
    %c0_9 = arith.constant 0 : index
    %11 = vector.load %arg5[%c0_8, %c0_9] : memref<1x32xf32, #tpu.memory_space<vmem>>, vector<1x32xf32>
    %12 = vector.broadcast %11 : vector<1x32xf32> to vector<16x32xf32>
    %13 = arith.addf %10, %12 : vector<16x32xf32>
    %14 = arith.mulf %0, %4 : vector<16x32xf32>
    %cst_10 = arith.constant dense<0.000000e+00> : vector<16xf32>
    %15 = vector.multi_reduction <add>, %14, %cst_10 [1] : vector<16x32xf32> to vector<16xf32>
    %16 = vector.shape_cast %15 : vector<16xf32> to vector<16x1xf32>
    %cst_11 = arith.constant 2.000000e+00 : f32
    %17 = vector.broadcast %cst_11 : f32 to vector<16x32xf32>
    %18 = arith.mulf %17, %4 : vector<16x32xf32>
    %19 = arith.mulf %18, %13 : vector<16x32xf32>
    %cst_12 = arith.constant dense<0.000000e+00> : vector<16xf32>
    %20 = vector.multi_reduction <add>, %19, %cst_12 [1] : vector<16x32xf32> to vector<16xf32>
    %21 = vector.shape_cast %20 : vector<16xf32> to vector<16x1xf32>
    %cst_13 = arith.constant 0.00999999977 : f32
    %22 = vector.broadcast %cst_13 : f32 to vector<16x1xf32>
    %23 = arith.mulf %22, %16 : vector<16x1xf32>
    %24 = arith.addf %21, %23 : vector<16x1xf32>
    %25 = arith.mulf %18, %18 : vector<16x32xf32>
    %cst_14 = arith.constant dense<0.000000e+00> : vector<16xf32>
    %26 = vector.multi_reduction <add>, %25, %cst_14 [1] : vector<16x32xf32> to vector<16xf32>
    %27 = vector.shape_cast %26 : vector<16xf32> to vector<16x1xf32>
    %cst_15 = arith.constant 9.99999997E-7 : f32
    %28 = vector.broadcast %cst_15 : f32 to vector<16x1xf32>
    %29 = arith.addf %27, %28 : vector<16x1xf32>
    %30 = tpu.reciprocal %29 {approx = true} : vector<16x1xf32> -> vector<16x1xf32>
    %31 = arith.mulf %29, %30 : vector<16x1xf32>
    %cst_16 = arith.constant 2.000000e+00 : f32
    %32 = vector.broadcast %cst_16 : f32 to vector<16x1xf32>
    %33 = arith.subf %32, %31 : vector<16x1xf32>
    %34 = arith.mulf %30, %33 : vector<16x1xf32>
    %cst_17 = arith.constant 0.000000e+00 : f32
    %35 = vector.broadcast %cst_17 : f32 to vector<16x1xf32>
    %36 = arith.maximumf %24, %35 : vector<16x1xf32>
    %37 = arith.mulf %36, %34 : vector<16x1xf32>
    %38 = vector.broadcast %37 : vector<16x1xf32> to vector<16x32xf32>
    %39 = arith.mulf %18, %38 : vector<16x32xf32>
    %40 = arith.subf %13, %39 : vector<16x32xf32>
    %c0_18 = arith.constant 0 : index
    %c0_19 = arith.constant 0 : index
    %41 = vector.load %arg6[%c0_18, %c0_19] : memref<16x32xf32, #tpu.memory_space<vmem>>, vector<16x32xf32>
    tpu.vector_store %arg6[%c0_18, %c0_19], %40 {strides = array<i32>} : memref<16x32xf32, #tpu.memory_space<vmem>>, vector<16x32xf32>,
    return
  }
  func.func @transform_0(%arg0: i32) -> (i32, i32) {
    %c0_i32 = arith.constant 0 : i32
    %c0_i32_0 = arith.constant 0 : i32
    return %arg0, %c0_i32 : i32, i32
  }
  func.func @transform_1(%arg0: i32) -> (i32, i32) {
    %c0_i32 = arith.constant 0 : i32
    %c0_i32_0 = arith.constant 0 : i32
    %c0_i32_1 = arith.constant 0 : i32
    return %c0_i32, %c0_i32_0 : i32, i32
  }
  func.func @transform_2(%arg0: i32) -> (i32, i32) {
    %c0_i32 = arith.constant 0 : i32
    %c0_i32_0 = arith.constant 0 : i32
    %c0_i32_1 = arith.constant 0 : i32
    return %c0_i32, %c0_i32_0 : i32, i32
  }
  func.func @transform_3(%arg0: i32) -> (i32, i32) {
    %c0_i32 = arith.constant 0 : i32
    %c0_i32_0 = arith.constant 0 : i32
    %c0_i32_1 = arith.constant 0 : i32
    return %c0_i32, %c0_i32_0 : i32, i32
  }
  func.func @transform_4(%arg0: i32) -> (i32, i32) {
    %c0_i32 = arith.constant 0 : i32
    %c0_i32_0 = arith.constant 0 : i32
    %c0_i32_1 = arith.constant 0 : i32
    return %c0_i32, %c0_i32_0 : i32, i32
  }
  func.func @transform_5(%arg0: i32) -> (i32, i32) {
    %c0_i32 = arith.constant 0 : i32
    %c0_i32_0 = arith.constant 0 : i32
    return %arg0, %c0_i32 : i32, i32
  }
}

</mosaic_0001>

<llo_original>
// kernel: tpu_custom_call.1
$region0: #{tpu_custom_call.1}
  #allocation0 [shape = 'u32[]', space=smem, size = 0x4, offset = 0x4, fixed_abs, tag = 'smem constant byte address 0x4 - core index']
  #allocation1 [shape = 'u32[144,128]{1,0:T(1,128)}', space=vmem, size = 0x12000, scoped, tag = 'internal scratch']
  %s0 = inlined_call_operand.vmem [shape: f32[48,32], index: 0, kind: input, shape index: {}]
  %s1 = inlined_call_operand.vmem [shape: f32[32,64], index: 1, kind: input, shape index: {}]
  %s2 = inlined_call_operand.vmem [shape: f32[1,32], index: 2, kind: input, shape index: {}]
  %s3 = inlined_call_operand.vmem [shape: f32[32,32], index: 3, kind: input, shape index: {}]
  %s4 = inlined_call_operand.vmem [shape: f32[1,32], index: 4, kind: input, shape index: {}]
  %s5 = inlined_call_operand.vmem [shape: f32[48,32], index: 5, kind: output, shape index: {}]
  %s6 = sld [smem:[#allocation0]]
  $region53: #{tpu_custom_call.1} parent=0
    _
  %s8 = ssub.s32 1, %s6
  %s9 = scalar_select 0, %s8, %s6
  loop: start=0, step=1, limit=5
  $region2: #{tpu_custom_call.1} parent=0 // loop_pre_header
    _
  $region3: #{tpu_custom_call.1} parent=0 // loop_header
    %s11 = sphi 0, %s15
    %p12 = scmp.ge.s32.totalorder %s11, 5
    %s21 = sphi 0, %s23
    %s24 = sphi 0, %s21
    %s25 = sphi 0, %s24
    %s41 = sphi 0, %s25
    %s45 = sphi 0, %s45
    %s47 = sphi 0, %s45
    %s48 = sphi 0, %s47
    %s62 = sphi 0, %s48
    %s66 = sphi 0, %s66
    %s68 = sphi 0, %s66
    %s69 = sphi 0, %s68
    %s83 = sphi 0, %s69
    %s87 = sphi 0, %s87
    %s89 = sphi 0, %s87
    %s90 = sphi 0, %s89
    %s104 = sphi 0, %s90
    %s108 = sphi 0, %s108
    %s110 = sphi 0, %s108
    %s111 = sphi 0, %s110
    %s125 = sphi 0, %s111
    %s131 = sphi 0, %s133
    %s134 = sphi 0, %s131
    %s135 = sphi 0, %s134
    %s151 = sphi 0, %s135
  $region4: #{tpu_custom_call.1} parent=0 // loop_header_branch
    %14 = sbr.rel (%p12) target = $region8
  $region5: #{tpu_custom_call.1} parent=0 // loop_body
    %s16 = ssub.s32 %s11, 1
    %s17 = ssub.s32 %s11, 2
    %s18 = sadd.s32 %s11, 1
    %s19 = ssub.s32 %s11, %s18
    %p20 = scmp.eq.s32.totalorder %s19, 0
    %s22 = sadd.s32 %s21, 1
    %s23 = scalar_select %p20, %s21, %s22
    %p26 = pneg %p20
    %p27 = scmp.eq.s32.totalorder %s11, 2
    %p28 = por %p26, %p27
    %p29 = scmp.ne.s32.totalorder %s21, %s24
    %p30 = scmp.eq.s32.totalorder %s11, 0
    %p31 = por %p29, %p30
    %p32 = scmp.ne.s32.totalorder %s21, %s24
    %p33 = scmp.eq.s32.totalorder %s16, 2
    %p34 = por %p32, %p33
    %p35 = scmp.ne.s32.totalorder %s24, %s25
    %p36 = scmp.eq.s32.totalorder %s16, 0
    %p37 = por %p35, %p36
    %p38 = scmp.ne.s32.totalorder %s24, %s25
    %p39 = scmp.eq.s32.totalorder %s17, 2
    %p40 = por %p38, %p39
    %p42 = scmp.ne.s32.totalorder %s25, %s41
    %p43 = scmp.eq.s32.totalorder %s17, 0
    %p44 = por %p42, %p43
    %s46 = sadd.s32 %s45, 1
    %p49 = scmp.eq.s32.totalorder %s11, 2
    %p50 = scmp.ne.s32.totalorder %s45, %s47
    %p51 = scmp.eq.s32.totalorder %s11, 0
    %p52 = por %p50, %p51
    %p53 = scmp.ne.s32.totalorder %s45, %s47
    %p54 = scmp.eq.s32.totalorder %s16, 2
    %p55 = por %p53, %p54
    %p56 = scmp.ne.s32.totalorder %s47, %s48
    %p57 = scmp.eq.s32.totalorder %s16, 0
    %p58 = por %p56, %p57
    %p59 = scmp.ne.s32.totalorder %s47, %s48
    %p60 = scmp.eq.s32.totalorder %s17, 2
    %p61 = por %p59, %p60
    %p63 = scmp.ne.s32.totalorder %s48, %s62
    %p64 = scmp.eq.s32.totalorder %s17, 0
    %p65 = por %p63, %p64
    %s67 = sadd.s32 %s66, 1
    %p70 = scmp.eq.s32.totalorder %s11, 2
    %p71 = scmp.ne.s32.totalorder %s66, %s68
    %p72 = scmp.eq.s32.totalorder %s11, 0
    %p73 = por %p71, %p72
    %p74 = scmp.ne.s32.totalorder %s66, %s68
    %p75 = scmp.eq.s32.totalorder %s16, 2
    %p76 = por %p74, %p75
    %p77 = scmp.ne.s32.totalorder %s68, %s69
    %p78 = scmp.eq.s32.totalorder %s16, 0
    %p79 = por %p77, %p78
    %p80 = scmp.ne.s32.totalorder %s68, %s69
    %p81 = scmp.eq.s32.totalorder %s17, 2
    %p82 = por %p80, %p81
    %p84 = scmp.ne.s32.totalorder %s69, %s83
    %p85 = scmp.eq.s32.totalorder %s17, 0
    %p86 = por %p84, %p85
    %s88 = sadd.s32 %s87, 1
    %p91 = scmp.eq.s32.totalorder %s11, 2
    %p92 = scmp.ne.s32.totalorder %s87, %s89
    %p93 = scmp.eq.s32.totalorder %s11, 0
    %p94 = por %p92, %p93
    %p95 = scmp.ne.s32.totalorder %s87, %s89
    %p96 = scmp.eq.s32.totalorder %s16, 2
    %p97 = por %p95, %p96
    %p98 = scmp.ne.s32.totalorder %s89, %s90
    %p99 = scmp.eq.s32.totalorder %s16, 0
    %p100 = por %p98, %p99
    %p101 = scmp.ne.s32.totalorder %s89, %s90
    %p102 = scmp.eq.s32.totalorder %s17, 2
    %p103 = por %p101, %p102
    %p105 = scmp.ne.s32.totalorder %s90, %s104
    %p106 = scmp.eq.s32.totalorder %s17, 0
    %p107 = por %p105, %p106
    %s109 = sadd.s32 %s108, 1
    %p112 = scmp.eq.s32.totalorder %s11, 2
    %p113 = scmp.ne.s32.totalorder %s108, %s110
    %p114 = scmp.eq.s32.totalorder %s11, 0
    %p115 = por %p113, %p114
    %p116 = scmp.ne.s32.totalorder %s108, %s110
    %p117 = scmp.eq.s32.totalorder %s16, 2
    %p118 = por %p116, %p117
    %p119 = scmp.ne.s32.totalorder %s110, %s111
    %p120 = scmp.eq.s32.totalorder %s16, 0
    %p121 = por %p119, %p120
    %p122 = scmp.ne.s32.totalorder %s110, %s111
    %p123 = scmp.eq.s32.totalorder %s17, 2
    %p124 = por %p122, %p123
    %p126 = scmp.ne.s32.totalorder %s111, %s125
    %p127 = scmp.eq.s32.totalorder %s17, 0
    %p128 = por %p126, %p127
    %s129 = ssub.s32 %s11, %s18
    %p130 = scmp.eq.s32.totalorder %s129, 0
    %s132 = sadd.s32 %s131, 1
    %s133 = scalar_select %p130, %s131, %s132
    %p136 = pneg %p130
    %p137 = scmp.eq.s32.totalorder %s11, 2
    %p138 = por %p136, %p137
    %p139 = scmp.ne.s32.totalorder %s131, %s134
    %p140 = scmp.eq.s32.totalorder %s11, 0
    %p141 = por %p139, %p140
    %p142 = scmp.ne.s32.totalorder %s131, %s134
    %p143 = scmp.eq.s32.totalorder %s16, 2
    %p144 = por %p142, %p143
    %p145 = scmp.ne.s32.totalorder %s134, %s135
    %p146 = scmp.eq.s32.totalorder %s16, 0
    %p147 = por %p145, %p146
    %p148 = scmp.ne.s32.totalorder %s134, %s135
    %p149 = scmp.eq.s32.totalorder %s17, 2
    %p150 = por %p148, %p149
    %p152 = scmp.ne.s32.totalorder %s135, %s151
    %p153 = scmp.eq.s32.totalorder %s17, 0
    %p154 = por %p152, %p153
    %p155 = scmp.le.s32.totalorder 1, %s11
    %p156 = scmp.lt.s32.totalorder %s11, 4
    %p157 = pnand %p155, %p156
    %p158 = pneg %p157
    // Predicated region
    $region9: #{tpu_custom_call.1} parent=5 // pred_check
      _
    $region10: #{tpu_custom_call.1} parent=5 // pred_check_branch
      %160 = sbr.rel (%p157) target = $region12
    $region11: #{tpu_custom_call.1} parent=5 // pred_region
      %s161 = ssub.s32 %s11, 1
      // Predicated region
      $region13: #{tpu_custom_call.1} parent=11 // pred_check
        %p162 = pneg %p58
      $region14: #{tpu_custom_call.1} parent=11 // pred_check_branch
        %164 = sbr.rel (%p162) target = $region16
      $region15: #{tpu_custom_call.1} parent=11 // pred_region
        _
      $region16: #{tpu_custom_call.1} parent=11 // pred_fallthru
        _
      // Predicated region
      $region17: #{tpu_custom_call.1} parent=11 // pred_check
        %p165 = pneg %p79
      $region18: #{tpu_custom_call.1} parent=11 // pred_check_branch
        %167 = sbr.rel (%p165) target = $region20
      $region19: #{tpu_custom_call.1} parent=11 // pred_region
        _
      $region20: #{tpu_custom_call.1} parent=11 // pred_fallthru
        _
      // Predicated region
      $region21: #{tpu_custom_call.1} parent=11 // pred_check
        %p168 = pneg %p100
      $region22: #{tpu_custom_call.1} parent=11 // pred_check_branch
        %170 = sbr.rel (%p168) target = $region24
      $region23: #{tpu_custom_call.1} parent=11 // pred_region
        _
      $region24: #{tpu_custom_call.1} parent=11 // pred_fallthru
        _
      // Predicated region
      $region25: #{tpu_custom_call.1} parent=11 // pred_check
        %p171 = pneg %p121
      $region26: #{tpu_custom_call.1} parent=11 // pred_check_branch
        %173 = sbr.rel (%p171) target = $region28
      $region27: #{tpu_custom_call.1} parent=11 // pred_region
        _
      $region28: #{tpu_custom_call.1} parent=11 // pred_fallthru
        _
    $region12: #{tpu_custom_call.1} parent=5 // pred_fallthru
      _
    %p174 = scmp.lt.s32.totalorder %s11, 3
    // Predicated region
    $region29: #{tpu_custom_call.1} parent=5 // pred_check
      %p175 = pneg %p174
    $region30: #{tpu_custom_call.1} parent=5 // pred_check_branch
      %177 = sbr.rel (%p175) target = $region32
    $region31: #{tpu_custom_call.1} parent=5 // pred_region
      // Predicated region
      $region33: #{tpu_custom_call.1} parent=31 // pred_check
        %p178 = pneg %p31
      $region34: #{tpu_custom_call.1} parent=31 // pred_check_branch
        %180 = sbr.rel (%p178) target = $region36
      $region35: #{tpu_custom_call.1} parent=31 // pred_region
        %s181 = smul.u32 2, %s11
        %p182 = scmp.lt.s32.totalorder %s181, 5
        %s183 = scalar_select %p182, %s181, 5
        %s184 = smul.addr %s183, 8
        %s185 = scalar_lea.vmem %s0, %s184
        %s186 = smul.u32 2, %s11
      $region36: #{tpu_custom_call.1} parent=31 // pred_fallthru
        _
    $region32: #{tpu_custom_call.1} parent=5 // pred_fallthru
      _
    %p187 = scmp.le.s32.totalorder 1, %s11
    %p188 = scmp.lt.s32.totalorder %s11, 4
    %p189 = pnand %p187, %p188
    %p190 = pneg %p189
    // Predicated region
    $region37: #{tpu_custom_call.1} parent=5 // pred_check
      _
    $region38: #{tpu_custom_call.1} parent=5 // pred_check_branch
      %192 = sbr.rel (%p189) target = $region40
    $region39: #{tpu_custom_call.1} parent=5 // pred_region
      %s193 = ssub.s32 %s11, 1
      %s194 = smul.u32 2, %s16
      %p195 = scmp.lt.s32.totalorder %s194, 5
      %s196 = scalar_select %p195, %s194, 5
      %s197 = smul.addr %s196, 8
      %s198 = scalar_lea.vmem %s0, %s197
      %p199 = pneg %p37
      %p200 = pneg %p34
      %p201 = pneg %p58
      %p202 = pneg %p55
      %p203 = pneg %p79
      %p204 = pneg %p76
      %p205 = pneg %p100
      %p206 = pneg %p97
      %p207 = pneg %p121
      %p208 = pneg %p118
      %p209 = pneg %p147
      %p210 = pneg %p144
      %s211 = smul.u32 2, %s16
      %p212 = scmp.lt.s32.totalorder %s211, 5
      %s213 = scalar_select %p212, %s211, 5
      %s214 = smul.addr %s213, 8
      %s215 = scalar_lea.vmem %s5, %s214
      %s216 = smul.u32 2, %s16
      %p217 = scmp.lt.s32.totalorder %s216, 5
      %s218 = scalar_select %p217, %s216, 5
      %s219 = smul.addr %s218, 8
      %s220 = scalar_lea.vmem %s0, %s219
      %s221 = smul.u32 2, %s16
      %s222 = smul.u32 2, %s16
      %p223 = scmp.lt.s32.totalorder %s222, 5
      %s224 = scalar_select %p223, %s222, 5
      %s225 = smul.addr %s224, 8
      %s226 = scalar_lea.vmem %s5, %s225
      %s227 = smul.u32 2, %s16
      %v228 = vld [vmem:[%s220] sm:$0xff]
      %v229 = vld [vmem:[%s220 + $0x8] sm:$0xff]
      %v230 = vld [vmem:[%s1] sm:$0xff]
      %v231 = vld [vmem:[%s1 + $0x8] sm:$0xff]
      %v232 = vld [vmem:[%s1 + $0x10] sm:$0xff]
      %v233 = vld [vmem:[%s1 + $0x18] sm:$0xff]
      %vm234 = vcmask 261120
      %v236 = vsel %vm234, %v228, 0
      %v239 = vsel %vm234, %v229, 0
      %241 = vmatprep.subr.mxu0 0.0
      %242 = vmatpush1.msra.mxu0 %v230
      %243 = vmatprep.subr.mxu0 0.0
      %244 = vmatpush1.msra.mxu0 %v231
      %245 = vmatprep.subr.mxu0 0.0
      %246 = vmatpush1.msra.mxu0 %v232
      %247 = vmatprep.subr.mxu0 0.0
      %248 = vmatpush1.msra.mxu0 %v233
      %249 = vmatprep.subr.mxu0 0.0
      %250 = vmatpush1.msra.mxu0 0.0
      %251 = vmatprep.subr.mxu0 0.0
      %252 = vmatpush1.msra.mxu0 0.0
      %253 = vmatprep.subr.mxu0 0.0
      %254 = vmatpush1.msra.mxu0 0.0
      %255 = vmatprep.subr.mxu0 0.0
      %256 = vmatpush1.msra.mxu0 0.0
      %257 = vmatprep.subr.mxu0 0.0
      %258 = vmatpush1.msra.mxu0 0.0
      %259 = vmatprep.subr.mxu0 0.0
      %260 = vmatpush1.msra.mxu0 0.0
      %261 = vmatprep.subr.mxu0 0.0
      %262 = vmatpush1.msra.mxu0 0.0
      %263 = vmatprep.subr.mxu0 0.0
      %264 = vmatpush1.msra.mxu0 0.0
      %265 = vmatprep.subr.mxu0 0.0
      %266 = vmatpush1.msra.mxu0 0.0
      %267 = vmatprep.subr.mxu0 0.0
      %268 = vmatpush1.msra.mxu0 0.0
      %269 = vmatprep.subr.mxu0 0.0
      %270 = vmatpush1.msra.mxu0 0.0
      %271 = vmatprep.subr.mxu0 0.0
      %272 = vmatpush1.msra.mxu0 0.0
      %273 = vmatprep.subr.mxu0 0.0
      %274 = vmatpush1.msra.mxu0 0.0
      %275 = vmatprep.subr.mxu0 0.0
      %276 = vmatpush1.msra.mxu0 0.0
      %277 = vmatprep.subr.mxu0 0.0
      %278 = vmatpush1.msra.mxu0 0.0
      %279 = vmatprep.subr.mxu0 0.0
      %280 = vmatpush1.msra.mxu0 0.0
      %281 = vmatprep.subr.mxu0 0.0
      %282 = vmatpush1.msra.mxu0 0.0
      %283 = vmatprep.subr.mxu0 0.0
      %284 = vmatpush1.msra.mxu0 0.0
      %285 = vmatprep.subr.mxu0 0.0
      %286 = vmatpush1.msra.mxu0 0.0
      %287 = vmatprep.subr.mxu0 0.0
      %288 = vmatpush1.msra.mxu0 0.0
      %289 = vmatprep.subr.mxu0 0.0
      %290 = vmatpush1.msra.mxu0 0.0
      %291 = vmatprep.subr.mxu0 0.0
      %292 = vmatpush1.msra.mxu0 0.0
      %293 = vmatprep.subr.mxu0 0.0
      %294 = vmatpush1.msra.mxu0 0.0
      %295 = vmatprep.subr.mxu0 0.0
      %296 = vmatpush1.msra.mxu0 0.0
      %297 = vmatprep.subr.mxu0 0.0
      %298 = vmatpush1.msra.mxu0 0.0
      %299 = vmatprep.subr.mxu0 0.0
      %300 = vmatpush1.msra.mxu0 0.0
      %301 = vmatprep.subr.mxu0 0.0
      %302 = vmatpush1.msra.mxu0 0.0
      %303 = vmatprep.subr.mxu0 0.0
      %304 = vmatpush1.msra.mxu0 0.0
      %305 = vmatprep.mubr.f32.mxu0 0.0
      %306 = vmatmul.mubr.f32.gmra.mrb[0].mxu0 %v236
      %v307 = vpop.f32.mrb[0].mxu0
      %v308 = vadd.f32 0.0, %v307
      %v309 = vpop.f32.mrb[0].mxu0
      %310 = vmatprep.mubr.f32.mxu0 0.0
      %311 = vmatmul.mubr.f32.gmra.mrb[0].mxu0 %v239
      %v312 = vpop.f32.mrb[0].mxu0
      %v313 = vadd.f32 0.0, %v312
      %v314 = vpop.f32.mrb[0].mxu0
      %315 = vdwg.mxu0
      %v316 = vld [vmem:[%s2] sm:$0x1]
      %v318 = vlaneseq
      %v319 = vshrl.u32 %v318, 7
      %v320 = vsub.s32 0, %v319
      %v321 = vrot.slane %v316, %v320
      %v323 = vadd.f32 %v308, %v321
      %v324 = vadd.f32 %v313, %v321
      %v325 = vtanh.pop %v323
      %v326 = vtanh.pop %v324
      %v327 = vld [vmem:[%s3] sm:$0xff]
      %v328 = vld [vmem:[%s3 + $0x8] sm:$0xff]
      %v329 = vld [vmem:[%s3 + $0x10] sm:$0xff]
      %v330 = vld [vmem:[%s3 + $0x18] sm:$0xff]
      %v331 = vld [vmem:[%s4] sm:$0x1]
      %v333 = vlaneseq
      %v334 = vshrl.u32 %v333, 7
      %v335 = vsub.s32 0, %v334
      %v336 = vrot.slane %v331, %v335
      %v339 = vsel %vm234, %v325, 0
      %v342 = vsel %vm234, %v326, 0
      %344 = vmatprep.subr.mxu0 0.0
      %345 = vmatpush1.msra.mxu0 %v327
      %346 = vmatprep.subr.mxu0 0.0
      %347 = vmatpush1.msra.mxu0 %v328
      %348 = vmatprep.subr.mxu0 0.0
      %349 = vmatpush1.msra.mxu0 %v329
      %350 = vmatprep.subr.mxu0 0.0
      %351 = vmatpush1.msra.mxu0 %v330
      %352 = vmatprep.subr.mxu0 0.0
      %353 = vmatpush1.msra.mxu0 0.0
      %354 = vmatprep.subr.mxu0 0.0
      %355 = vmatpush1.msra.mxu0 0.0
      %356 = vmatprep.subr.mxu0 0.0
      %357 = vmatpush1.msra.mxu0 0.0
      %358 = vmatprep.subr.mxu0 0.0
      %359 = vmatpush1.msra.mxu0 0.0
      %360 = vmatprep.subr.mxu0 0.0
      %361 = vmatpush1.msra.mxu0 0.0
      %362 = vmatprep.subr.mxu0 0.0
      %363 = vmatpush1.msra.mxu0 0.0
      %364 = vmatprep.subr.mxu0 0.0
      %365 = vmatpush1.msra.mxu0 0.0
      %366 = vmatprep.subr.mxu0 0.0
      %367 = vmatpush1.msra.mxu0 0.0
      %368 = vmatprep.subr.mxu0 0.0
      %369 = vmatpush1.msra.mxu0 0.0
      %370 = vmatprep.subr.mxu0 0.0
      %371 = vmatpush1.msra.mxu0 0.0
      %372 = vmatprep.subr.mxu0 0.0
      %373 = vmatpush1.msra.mxu0 0.0
      %374 = vmatprep.subr.mxu0 0.0
      %375 = vmatpush1.msra.mxu0 0.0
      %376 = vmatprep.subr.mxu0 0.0
      %377 = vmatpush1.msra.mxu0 0.0
      %378 = vmatprep.subr.mxu0 0.0
      %379 = vmatpush1.msra.mxu0 0.0
      %380 = vmatprep.subr.mxu0 0.0
      %381 = vmatpush1.msra.mxu0 0.0
      %382 = vmatprep.subr.mxu0 0.0
      %383 = vmatpush1.msra.mxu0 0.0
      %384 = vmatprep.subr.mxu0 0.0
      %385 = vmatpush1.msra.mxu0 0.0
      %386 = vmatprep.subr.mxu0 0.0
      %387 = vmatpush1.msra.mxu0 0.0
      %388 = vmatprep.subr.mxu0 0.0
      %389 = vmatpush1.msra.mxu0 0.0
      %390 = vmatprep.subr.mxu0 0.0
      %391 = vmatpush1.msra.mxu0 0.0
      %392 = vmatprep.subr.mxu0 0.0
      %393 = vmatpush1.msra.mxu0 0.0
      %394 = vmatprep.subr.mxu0 0.0
      %395 = vmatpush1.msra.mxu0 0.0
      %396 = vmatprep.subr.mxu0 0.0
      %397 = vmatpush1.msra.mxu0 0.0
      %398 = vmatprep.subr.mxu0 0.0
      %399 = vmatpush1.msra.mxu0 0.0
      %400 = vmatprep.subr.mxu0 0.0
      %401 = vmatpush1.msra.mxu0 0.0
      %402 = vmatprep.subr.mxu0 0.0
      %403 = vmatpush1.msra.mxu0 0.0
      %404 = vmatprep.subr.mxu0 0.0
      %405 = vmatpush1.msra.mxu0 0.0
      %406 = vmatprep.subr.mxu0 0.0
      %407 = vmatpush1.msra.mxu0 0.0
      %408 = vmatprep.mubr.f32.mxu0 0.0
      %409 = vmatmul.mubr.f32.gmra.mrb[0].mxu0 %v339
      %v410 = vpop.f32.mrb[0].mxu0
      %v411 = vadd.f32 %v336, %v410
      %v412 = vpop.f32.mrb[0].mxu0
      %413 = vmatprep.mubr.f32.mxu0 0.0
      %414 = vmatmul.mubr.f32.gmra.mrb[0].mxu0 %v342
      %v415 = vpop.f32.mrb[0].mxu0
      %v416 = vadd.f32 %v336, %v415
      %v417 = vpop.f32.mrb[0].mxu0
      %418 = vdwg.mxu0
      %421 = vrot.lane.b32.xlu0 %v308, 96
      %v422 = vpop.permute.xlu0 %421
      %423 = vrot.lane.b32.xlu0 %v313, 96
      %v424 = vpop.permute.xlu0 %423
      %v427 = vmul.f32 %v228, %v422
      %v428 = vmul.f32 %v229, %v424
      %v429 = vsel %vm234, %v427, 0.0
      %430 = vadd.xlane.f32.xlu0 %v429
      %v431 = vpop.xlane.xlu0 %430
      %v432 = vsel %vm234, %v428, 0.0
      %433 = vadd.xlane.f32.xlu0 %v432
      %v434 = vpop.xlane.xlu0 %433
      %v435 = vmul.f32 %v308, 2.0
      %v436 = vmul.f32 %v313, 2.0
      %439 = vrot.lane.b32.xlu0 %v411, 32
      %v440 = vpop.permute.xlu0 %439
      %441 = vrot.lane.b32.xlu0 %v416, 32
      %v442 = vpop.permute.xlu0 %441
      %v445 = vmul.f32 %v435, %v440
      %v446 = vmul.f32 %v436, %v442
      %449 = vrot.lane.b32.xlu0 %v445, 96
      %v450 = vpop.permute.xlu0 %449
      %451 = vrot.lane.b32.xlu0 %v446, 96
      %v452 = vpop.permute.xlu0 %451
      %v455 = vsel %vm234, %v450, 0.0
      %456 = vadd.xlane.f32.xlu0 %v455
      %v457 = vpop.xlane.xlu0 %456
      %v458 = vsel %vm234, %v452, 0.0
      %459 = vadd.xlane.f32.xlu0 %v458
      %v460 = vpop.xlane.xlu0 %459
      %v461 = vmul.f32 %v431, 0.01
      %v462 = vmul.f32 %v434, 0.01
      %v463 = vadd.f32 %v457, %v461
      %v464 = vadd.f32 %v460, %v462
      %v465 = vmul.f32 %v435, %v435
      %v466 = vmul.f32 %v436, %v436
      %469 = vrot.lane.b32.xlu0 %v465, 96
      %v470 = vpop.permute.xlu0 %469
      %471 = vrot.lane.b32.xlu0 %v466, 96
      %v472 = vpop.permute.xlu0 %471
      %v475 = vsel %vm234, %v470, 0.0
      %476 = vadd.xlane.f32.xlu0 %v475
      %v477 = vpop.xlane.xlu0 %476
      %v478 = vsel %vm234, %v472, 0.0
      %479 = vadd.xlane.f32.xlu0 %v478
      %v480 = vpop.xlane.xlu0 %479
      %v481 = vadd.f32 %v477, 1e-06
      %v482 = vadd.f32 %v480, 1e-06
      %v483 = vrcp.pop %v481
      %v484 = vrcp.pop %v482
      %v485 = vmul.f32 %v481, %v483
      %v486 = vmul.f32 %v482, %v484
      %v487 = vsub.f32 2.0, %v485
      %v488 = vsub.f32 2.0, %v486
      %v489 = vmul.f32 %v483, %v487
      %v490 = vmul.f32 %v484, %v488
      %v491 = vmax.f32 %v463, 0.0
      %v492 = vmax.f32 %v464, 0.0
      %v493 = vmul.f32 %v491, %v489
      %v494 = vmul.f32 %v492, %v490
      %v495 = vmul.f32 %v435, %v493
      %v496 = vmul.f32 %v436, %v494
      %499 = vrot.lane.b32.xlu0 %v495, 96
      %v500 = vpop.permute.xlu0 %499
      %501 = vrot.lane.b32.xlu0 %v496, 96
      %v502 = vpop.permute.xlu0 %501
      %v505 = vsub.f32 %v411, %v500
      %v506 = vsub.f32 %v416, %v502
      %507 = vst.msk [vmem:[%s226] sm:$0xff] %vm234, %v505
      %508 = vst.msk [vmem:[%s226 + $0x8] sm:$0xff] %vm234, %v506
      %s509 = smul.u32 2, %s16
      %p510 = scmp.lt.s32.totalorder %s509, 5
      %s511 = scalar_select %p510, %s509, 5
      %s512 = smul.addr %s511, 8
      %s513 = scalar_lea.vmem %s5, %s512
      // Predicated region
      $region41: #{tpu_custom_call.1} parent=39 // pred_check
        %p514 = pneg %p144
      $region42: #{tpu_custom_call.1} parent=39 // pred_check_branch
        %516 = sbr.rel (%p514) target = $region44
      $region43: #{tpu_custom_call.1} parent=39 // pred_region
        %s517 = smul.u32 2, %s16
      $region44: #{tpu_custom_call.1} parent=39 // pred_fallthru
        _
    $region40: #{tpu_custom_call.1} parent=5 // pred_fallthru
      _
    %p518 = scmp.le.s32.totalorder 2, %s11
    // Predicated region
    $region45: #{tpu_custom_call.1} parent=5 // pred_check
      %p519 = pneg %p518
    $region46: #{tpu_custom_call.1} parent=5 // pred_check_branch
      %521 = sbr.rel (%p519) target = $region48
    $region47: #{tpu_custom_call.1} parent=5 // pred_region
      %s522 = ssub.s32 %s11, 2
      // Predicated region
      $region49: #{tpu_custom_call.1} parent=47 // pred_check
        %p523 = pneg %p150
      $region50: #{tpu_custom_call.1} parent=47 // pred_check_branch
        %525 = sbr.rel (%p523) target = $region52
      $region51: #{tpu_custom_call.1} parent=47 // pred_region
        %s526 = smul.u32 2, %s17
        %p527 = scmp.lt.s32.totalorder %s526, 5
        %s528 = scalar_select %p527, %s526, 5
        %s529 = smul.addr %s528, 8
        %s530 = scalar_lea.vmem %s5, %s529
      $region52: #{tpu_custom_call.1} parent=47 // pred_fallthru
        _
    $region48: #{tpu_custom_call.1} parent=5 // pred_fallthru
      _
  $region6: #{tpu_custom_call.1} parent=0 // loop_footer
    %s15 = sadd.s32 1, %s11
  $region7: #{tpu_custom_call.1} parent=0 // loop_footer_branch
    %10 = sbr.rel target = $region3
  $region8: #{tpu_custom_call.1} parent=0 // loop_exit
    _

</llo_original>
